<compile_context>
chip_gen: v7x
topology: tpu7x:2x2x1
jax: 0.10.0
libtpu: 0.0.40
codegen_flags: <defaults>
</compile_context>

<pallas_src>
import math

import jax
import jax.numpy as jnp
from jax.experimental import pallas as pl
from jax.experimental.pallas import tpu as pltpu


def _qfunc_kernel(xT_ref, w1T_ref, b1_ref, w2T_ref, b2_ref, w3_ref, b3_ref, o_ref):
    # Layer 1 (concat fused via pre-built x^T): (h1, in_dim) @ (in_dim, TB).
    h = jnp.dot(w1T_ref[...], xT_ref[...], preferred_element_type=jnp.float32)
    h = jnp.maximum(h + b1_ref[...], 0.0)                     # f32 bias/ReLU
    # Layer 2: (h2, h1) @ (h1, TB); matmul inputs in io dtype, accumulate f32.
    h = jnp.dot(w2T_ref[...], h.astype(w2T_ref.dtype),
                preferred_element_type=jnp.float32)
    h = jnp.maximum(h + b2_ref[...], 0.0)
    # Layer 3 (h2 -> 1): sublane reduction instead of an M=1 MXU matmul.
    q = jnp.sum(h * w3_ref[...], axis=0, keepdims=True) + b3_ref[0]   # (1, TB)
    o_ref[...] = q.astype(o_ref.dtype)                        # lane-dense store


def _round_up(x, m):
    return ((x + m - 1) // m) * m


def mlp_qfunction_forward(obs, act, params, *, tile_b=1024, io_dtype=jnp.float32):
    """Pallas forward of MLPQFunction. Returns q of shape (B,), float32.

    io_dtype: dtype for the streamed x^T tiles and hidden-layer weights
    (use jnp.bfloat16 on v6e/v7x to halve HBM traffic; accumulation stays f32).
    """
    w1, b1, w2, b2, w3, b3 = params
    B = obs.shape[0]
    in_dim = obs.shape[1] + act.shape[1]
    h1 = w1.shape[1]
    h2 = w2.shape[1]

    # Batch tile must be a multiple of 128 (lane axis); don't over-pad tiny B.
    req = max(128, (int(tile_b) // 128) * 128)
    tb = min(req, _round_up(B, 128))
    b_pad = _round_up(B, tb)
    num_tiles = b_pad // tb

    # Fused transpose + concat + pad: x^T is (in_dim, B_pad), batch on lanes.
    # TODO(synk): this is one extra HBM pass over the (small) inputs; it could
    # be folded into the kernel with an in-kernel XLU transpose if it ever
    # shows up in a profile.
    xT = jnp.concatenate([obs.T, act.T], axis=0).astype(io_dtype)
    if b_pad != B:
        xT = jnp.pad(xT, ((0, 0), (0, b_pad - B)))

    # Weight/bias layout (done once per call here; pre-layout in real use).
    w1T = w1.T.astype(io_dtype)                     # (h1, in_dim)
    w2T = w2.T.astype(io_dtype)                     # (h2, h1)
    b1c = b1.reshape(h1, 1).astype(jnp.float32)     # (h1, 1)
    b2c = b2.reshape(h2, 1).astype(jnp.float32)     # (h2, 1)
    w3c = w3.reshape(h2, 1).astype(jnp.float32)     # (h2, 1)
    b3s = b3.reshape(1).astype(jnp.float32)         # (1,) scalar -> SMEM

    const = lambda i: (0, 0)   # weights/biases: same block every grid step

    q_row = pl.pallas_call(
        _qfunc_kernel,
        out_shape=jax.ShapeDtypeStruct((1, b_pad), jnp.float32),
        grid=(num_tiles,),
        in_specs=[
            pl.BlockSpec((in_dim, tb), lambda i: (0, i)),        # x^T tiles
            pl.BlockSpec((h1, in_dim), const),                   # W1^T resident
            pl.BlockSpec((h1, 1), const),                        # b1
            pl.BlockSpec((h2, h1), const),                       # W2^T resident
            pl.BlockSpec((h2, 1), const),                        # b2
            pl.BlockSpec((h2, 1), const),                        # w3 column
            pl.BlockSpec(memory_space=pltpu.MemorySpace.SMEM),   # b3 scalar
        ],
        out_specs=pl.BlockSpec((1, tb), lambda i: (0, i)),       # lane-dense
        compiler_params=pltpu.CompilerParams(
            dimension_semantics=("parallel",)),                  # v7x dual-TC
    )(xT, w1T, b1c, w2T, b2c, w3c, b3s)

    return q_row.reshape(-1)[:B]      # torch.squeeze(q, -1)


def init_params(key, obs_dim, act_dim, hidden_sizes):
    """torch.nn.Linear-style init: U(-1/sqrt(fan_in), +1/sqrt(fan_in))."""
    sizes = [obs_dim + act_dim] + list(hidden_sizes) + [1]
    params = []
    for j in range(len(sizes) - 1):
        fan_in, fan_out = sizes[j], sizes[j + 1]
        key, kw, kb = jax.random.split(key, 3)
        bound = 1.0 / math.sqrt(fan_in)
        w = jax.random.uniform(kw, (fan_in, fan_out), jnp.float32, -bound, bound)
        b = jax.random.uniform(kb, (fan_out,), jnp.float32, -bound, bound)
        params += [w, b]
    return tuple(params)


def _reference(obs, act, params):
    w1, b1, w2, b2, w3, b3 = params
    hp = jax.lax.Precision.HIGHEST
    x = jnp.concatenate([obs, act], axis=-1)
    h = jnp.maximum(jnp.dot(x, w1, precision=hp) + b1, 0.0)
    h = jnp.maximum(jnp.dot(h, w2, precision=hp) + b2, 0.0)
    return jnp.squeeze(jnp.dot(h, w3, precision=hp) + b3, -1)


if __name__ == "__main__":
    obs_dim, act_dim = 8, 4
    hidden_sizes = (32, 32)
    # q_range is stored by MLPQFunction.__init__ but unused in forward().

    key = jax.random.PRNGKey(0)
    kp, ko, ka, ko2, ka2 = jax.random.split(key, 5)
    params = init_params(kp, obs_dim, act_dim, hidden_sizes)

    # Small shape consistent with the module (single batch tile).
    B = 2
    obs = jax.random.normal(ko, (B, obs_dim), jnp.float32)
    act = jax.random.normal(ka, (B, act_dim), jnp.float32)
    q = mlp_qfunction_forward(obs, act, params)
    jax.block_until_ready(q)
    q_ref = _reference(obs, act, params)
    assert q.shape == (B,)
    assert jnp.allclose(q, q_ref, atol=1e-4, rtol=1e-4)

    # Multi-tile grid path (3 batch tiles of 128) + padding / slicing handling.
    B2 = 300
    obs2 = jax.random.normal(ko2, (B2, obs_dim), jnp.float32)
    act2 = jax.random.normal(ka2, (B2, act_dim), jnp.float32)
    q2 = mlp_qfunction_forward(obs2, act2, params, tile_b=128)
    jax.block_until_ready(q2)
    q2_ref = _reference(obs2, act2, params)
    assert q2.shape == (B2,)
    assert jnp.allclose(q2, q2_ref, atol=1e-4, rtol=1e-4)

    # bf16 HBM-storage path (v6e/v7x perf option); f32 accumulation inside.
    q2_bf16 = mlp_qfunction_forward(obs2, act2, params, tile_b=128,
                                    io_dtype=jnp.bfloat16)
    jax.block_until_ready(q2_bf16)
    assert q2_bf16.shape == (B2,)
    assert jnp.allclose(q2_bf16, q2_ref, atol=1e-1, rtol=1e-1)

    print("KERNEL_OK")
</pallas_src>

<mosaic_0001>
module attributes {stable_mosaic.version = 11 : i64} {
  func.func @_qfunc_kernel(%arg0: i32, %arg1: memref<12x128xf32, #tpu.memory_space<vmem>>, %arg2: memref<32x12xf32, #tpu.memory_space<vmem>>, %arg3: memref<32x1xf32, #tpu.memory_space<vmem>>, %arg4: memref<32x32xf32, #tpu.memory_space<vmem>>, %arg5: memref<32x1xf32, #tpu.memory_space<vmem>>, %arg6: memref<32x1xf32, #tpu.memory_space<vmem>>, %arg7: memref<1xf32, #tpu.memory_space<smem>>, %arg8: memref<1x128xf32, #tpu.memory_space<vmem>>) attributes {dimension_semantics = [#tpu.dimension_semantics<parallel>], iteration_bounds = array<i64: 1>, scalar_prefetch = 0 : i64, scratch_operands = 0 : i64, tpu.core_type = #tpu.core_type<tc>, window_params = [{transform_indices = @transform_0, window_bounds = array<i64: 12, 128>}, {pipeline_mode = #tpu.pipeline_mode<synchronous>, transform_indices = @transform_1, window_bounds = array<i64: 32, 12>}, {pipeline_mode = #tpu.pipeline_mode<synchronous>, transform_indices = @transform_2, window_bounds = array<i64: 32, 1>}, {pipeline_mode = #tpu.pipeline_mode<synchronous>, transform_indices = @transform_3, window_bounds = array<i64: 32, 32>}, {pipeline_mode = #tpu.pipeline_mode<synchronous>, transform_indices = @transform_4, window_bounds = array<i64: 32, 1>}, {pipeline_mode = #tpu.pipeline_mode<synchronous>, transform_indices = @transform_5, window_bounds = array<i64: 32, 1>}, {transform_indices = @transform_6, window_bounds = array<i64: 1>}, {transform_indices = @transform_7, window_bounds = array<i64: 1, 128>}]} {
    %c0 = arith.constant 0 : index
    %c0_0 = arith.constant 0 : index
    %0 = vector.load %arg2[%c0, %c0_0] : memref<32x12xf32, #tpu.memory_space<vmem>>, vector<32x12xf32>
    %c0_1 = arith.constant 0 : index
    %c0_2 = arith.constant 0 : index
    %1 = vector.load %arg1[%c0_1, %c0_2] : memref<12x128xf32, #tpu.memory_space<vmem>>, vector<12x128xf32>
    %cst = arith.constant dense<0.000000e+00> : vector<32x128xf32>
    %2 = tpu.matmul %0, %1, %cst {dimension_numbers = #tpu.dot_dimension_numbers<[1], [0], [0], [1], [0, 0, 1, 1], [], []>} : vector<32x12xf32>, vector<12x128xf32>, vector<32x128xf32> -> vector<32x128xf32>
    %c0_3 = arith.constant 0 : index
    %c0_4 = arith.constant 0 : index
    %3 = vector.load %arg3[%c0_3, %c0_4] : memref<32x1xf32, #tpu.memory_space<vmem>>, vector<32x1xf32>
    %4 = vector.broadcast %3 : vector<32x1xf32> to vector<32x128xf32>
    %5 = arith.addf %2, %4 : vector<32x128xf32>
    %cst_5 = arith.constant 0.000000e+00 : f32
    %6 = vector.broadcast %cst_5 : f32 to vector<32x128xf32>
    %7 = arith.maximumf %5, %6 : vector<32x128xf32>
    %c0_6 = arith.constant 0 : index
    %c0_7 = arith.constant 0 : index
    %8 = vector.load %arg4[%c0_6, %c0_7] : memref<32x32xf32, #tpu.memory_space<vmem>>, vector<32x32xf32>
    %cst_8 = arith.constant dense<0.000000e+00> : vector<32x128xf32>
    %9 = tpu.matmul %8, %7, %cst_8 {dimension_numbers = #tpu.dot_dimension_numbers<[1], [0], [0], [1], [0, 0, 1, 1], [], []>} : vector<32x32xf32>, vector<32x128xf32>, vector<32x128xf32> -> vector<32x128xf32>
    %c0_9 = arith.constant 0 : index
    %c0_10 = arith.constant 0 : index
    %10 = vector.load %arg5[%c0_9, %c0_10] : memref<32x1xf32, #tpu.memory_space<vmem>>, vector<32x1xf32>
    %11 = vector.broadcast %10 : vector<32x1xf32> to vector<32x128xf32>
    %12 = arith.addf %9, %11 : vector<32x128xf32>
    %cst_11 = arith.constant 0.000000e+00 : f32
    %13 = vector.broadcast %cst_11 : f32 to vector<32x128xf32>
    %14 = arith.maximumf %12, %13 : vector<32x128xf32>
    %c0_12 = arith.constant 0 : index
    %c0_13 = arith.constant 0 : index
    %15 = vector.load %arg6[%c0_12, %c0_13] : memref<32x1xf32, #tpu.memory_space<vmem>>, vector<32x1xf32>
    %16 = vector.broadcast %15 : vector<32x1xf32> to vector<32x128xf32>
    %17 = arith.mulf %14, %16 : vector<32x128xf32>
    %cst_14 = arith.constant dense<0.000000e+00> : vector<128xf32>
    %18 = vector.multi_reduction <add>, %17, %cst_14 [0] : vector<32x128xf32> to vector<128xf32>
    %19 = vector.shape_cast %18 : vector<128xf32> to vector<1x128xf32>
    %c0_15 = arith.constant 0 : index
    %20 = memref.load %arg7[%c0_15] : memref<1xf32, #tpu.memory_space<smem>>
    %21 = vector.broadcast %20 : f32 to vector<1x128xf32>
    %22 = arith.addf %19, %21 : vector<1x128xf32>
    %c0_16 = arith.constant 0 : index
    %c0_17 = arith.constant 0 : index
    %23 = vector.load %arg8[%c0_16, %c0_17] : memref<1x128xf32, #tpu.memory_space<vmem>>, vector<1x128xf32>
    tpu.vector_store %arg8[%c0_16, %c0_17], %22 {strides = array<i32>} : memref<1x128xf32, #tpu.memory_space<vmem>>, vector<1x128xf32>,
    return
  }
  func.func @transform_0(%arg0: i32) -> (i32, i32) {
    %c0_i32 = arith.constant 0 : i32
    %c0_i32_0 = arith.constant 0 : i32
    return %c0_i32, %arg0 : i32, i32
  }
  func.func @transform_1(%arg0: i32) -> (i32, i32) {
    %c0_i32 = arith.constant 0 : i32
    %c0_i32_0 = arith.constant 0 : i32
    %c0_i32_1 = arith.constant 0 : i32
    return %c0_i32, %c0_i32_0 : i32, i32
  }
  func.func @transform_2(%arg0: i32) -> (i32, i32) {
    %c0_i32 = arith.constant 0 : i32
    %c0_i32_0 = arith.constant 0 : i32
    %c0_i32_1 = arith.constant 0 : i32
    return %c0_i32, %c0_i32_0 : i32, i32
  }
  func.func @transform_3(%arg0: i32) -> (i32, i32) {
    %c0_i32 = arith.constant 0 : i32
    %c0_i32_0 = arith.constant 0 : i32
    %c0_i32_1 = arith.constant 0 : i32
    return %c0_i32, %c0_i32_0 : i32, i32
  }
  func.func @transform_4(%arg0: i32) -> (i32, i32) {
    %c0_i32 = arith.constant 0 : i32
    %c0_i32_0 = arith.constant 0 : i32
    %c0_i32_1 = arith.constant 0 : i32
    return %c0_i32, %c0_i32_0 : i32, i32
  }
  func.func @transform_5(%arg0: i32) -> (i32, i32) {
    %c0_i32 = arith.constant 0 : i32
    %c0_i32_0 = arith.constant 0 : i32
    %c0_i32_1 = arith.constant 0 : i32
    return %c0_i32, %c0_i32_0 : i32, i32
  }
  func.func @transform_6(%arg0: i32) -> i32 {
    %c0_i32 = arith.constant 0 : i32
    %c0_i32_0 = arith.constant 0 : i32
    return %c0_i32 : i32
  }
  func.func @transform_7(%arg0: i32) -> (i32, i32) {
    %c0_i32 = arith.constant 0 : i32
    %c0_i32_0 = arith.constant 0 : i32
    return %c0_i32, %arg0 : i32, i32
  }
}

</mosaic_0001>

<llo_original>
// kernel: tpu_custom_call.1
$region0: #{tpu_custom_call.1}
  #allocation0 [shape = 'u32[]', space=smem, size = 0x4, offset = 0x4, fixed_abs, tag = 'smem constant byte address 0x4 - core index']
  #allocation1 [shape = 'u32[144,128]{1,0:T(1,128)}', space=vmem, size = 0x12000, scoped, tag = 'internal scratch']
  #allocation2 [shape = 'f32[1]{0:T(128)S(6)}', space=smem, size = 0x200, scoped, tag = 'scoped memory for tpu_custom_call.1']
  %s0 = inlined_call_operand.vmem [shape: f32[12,128], index: 0, kind: input, shape index: {}]
  %s1 = inlined_call_operand.vmem [shape: f32[32,12], index: 1, kind: input, shape index: {}]
  %s2 = inlined_call_operand.vmem [shape: f32[32,1], index: 2, kind: input, shape index: {}]
  %s3 = inlined_call_operand.vmem [shape: f32[32,32], index: 3, kind: input, shape index: {}]
  %s4 = inlined_call_operand.vmem [shape: f32[32,1], index: 4, kind: input, shape index: {}]
  %s5 = inlined_call_operand.vmem [shape: f32[32,1], index: 5, kind: input, shape index: {}]
  %s6 = inlined_call_operand.<no memory space> [shape: f32[1], index: 6, kind: input, shape index: {}]
  %s7 = inlined_call_operand.hbm [shape: f32[1,128], index: 7, kind: output, shape index: {}]
  %s8 = sld [smem:[#allocation0]]
  $region38: #{tpu_custom_call.1} parent=0
    _
  %s10 = ssub.s32 1, %s8
  %s11 = scalar_select 0, %s10, %s8
  %12 = sst [smem:[#allocation2]] %s6
  $region1: #{tpu_custom_call.1} parent=0
    #allocation3 [shape = 'u8[512]{0}', space=vmem, size = 0x400, scoped, tag = 'output window, operand 0, single buffered']
    #allocation4 [shape = 's32[1]{0}', space=sflag, size = 0x4, scoped, tag = 'scoped memory for tpu_custom_call.1']
    %13 = vsyncpa [#allocation4], 0
    // Predicated region
    $region2: #{tpu_custom_call.1} parent=1 // pred_check
      _
    $region3: #{tpu_custom_call.1} parent=1 // pred_check_branch
      %15 = sbr.rel (0) target = $region5
    $region4: #{tpu_custom_call.1} parent=1 // pred_region
      _
    $region5: #{tpu_custom_call.1} parent=1 // pred_fallthru
      _
    // Predicated region
    $region6: #{tpu_custom_call.1} parent=1 // pred_check
      _
    $region7: #{tpu_custom_call.1} parent=1 // pred_check_branch
      %17 = sbr.rel (0) target = $region9
    $region8: #{tpu_custom_call.1} parent=1 // pred_region
      _
    $region9: #{tpu_custom_call.1} parent=1 // pred_fallthru
      _
    // Predicated region
    $region10: #{tpu_custom_call.1} parent=1 // pred_check
      _
    $region11: #{tpu_custom_call.1} parent=1 // pred_check_branch
      %19 = sbr.rel (0) target = $region13
    $region12: #{tpu_custom_call.1} parent=1 // pred_region
      _
    $region13: #{tpu_custom_call.1} parent=1 // pred_fallthru
      _
    // Predicated region
    $region14: #{tpu_custom_call.1} parent=1 // pred_check
      _
    $region15: #{tpu_custom_call.1} parent=1 // pred_check_branch
      %21 = sbr.rel (0) target = $region17
    $region16: #{tpu_custom_call.1} parent=1 // pred_region
      _
    $region17: #{tpu_custom_call.1} parent=1 // pred_fallthru
      _
    // Predicated region
    $region18: #{tpu_custom_call.1} parent=1 // pred_check
      _
    $region19: #{tpu_custom_call.1} parent=1 // pred_check_branch
      %23 = sbr.rel (0) target = $region21
    $region20: #{tpu_custom_call.1} parent=1 // pred_region
      _
    $region21: #{tpu_custom_call.1} parent=1 // pred_fallthru
      _
    // Predicated region
    $region22: #{tpu_custom_call.1} parent=1 // pred_check
      _
    $region23: #{tpu_custom_call.1} parent=1 // pred_check_branch
      %25 = sbr.rel (0) target = $region25
    $region24: #{tpu_custom_call.1} parent=1 // pred_region
      _
    $region25: #{tpu_custom_call.1} parent=1 // pred_fallthru
      _
    // Predicated region
    $region26: #{tpu_custom_call.1} parent=1 // pred_check
      _
    $region27: #{tpu_custom_call.1} parent=1 // pred_check_branch
      %27 = sbr.rel (0) target = $region29
    $region28: #{tpu_custom_call.1} parent=1 // pred_region
      _
    $region29: #{tpu_custom_call.1} parent=1 // pred_fallthru
      _
    %v28 = vld [vmem:[%s1] sm:$0xff]
    %v29 = vld [vmem:[%s1 + $0x8] sm:$0xff]
    %v30 = vld [vmem:[%s1 + $0x10] sm:$0xff]
    %v31 = vld [vmem:[%s1 + $0x18] sm:$0xff]
    %v32 = vld [vmem:[%s0] sm:$0xff]
    %v33 = vld [vmem:[%s0 + $0x8] sm:$0xf]
    %v34 = vld [vmem:[%s2] sm:$0xff]
    %v35 = vld [vmem:[%s2 + $0x8] sm:$0xff]
    %v36 = vld [vmem:[%s2 + $0x10] sm:$0xff]
    %v37 = vld [vmem:[%s2 + $0x18] sm:$0xff]
    %39 = vset.pattern.permute.xlu0 0
    %40 = vperm.xlu0 %39, %v34
    %v41 = vpop.permute.xlu0 %40
    %44 = vset.pattern.permute.xlu0 0
    %45 = vperm.xlu0 %44, %v35
    %v46 = vpop.permute.xlu0 %45
    %49 = vset.pattern.permute.xlu0 0
    %50 = vperm.xlu0 %49, %v36
    %v51 = vpop.permute.xlu0 %50
    %54 = vset.pattern.permute.xlu0 0
    %55 = vperm.xlu0 %54, %v37
    %v56 = vpop.permute.xlu0 %55
    %vm58 = vcmask 97280
    %v60 = vsel %vm58, %v28, 0
    %v63 = vsel %vm58, %v29, 0
    %v66 = vsel %vm58, %v30, 0
    %v69 = vsel %vm58, %v31, 0
    %vm71 = vcmask 1043456
    %v73 = vsel %vm71, %v33, 0
    %75 = vmatprep.subr.mxu0 0.0
    %76 = vmatpush1.msra.mxu0 %v32
    %77 = vmatprep.subr.mxu0 0.0
    %78 = vmatpush1.msra.mxu0 %v73
    %79 = vmatprep.subr.mxu0 0.0
    %80 = vmatpush1.msra.mxu0 0.0
    %81 = vmatprep.subr.mxu0 0.0
    %82 = vmatpush1.msra.mxu0 0.0
    %83 = vmatprep.subr.mxu0 0.0
    %84 = vmatpush1.msra.mxu0 0.0
    %85 = vmatprep.subr.mxu0 0.0
    %86 = vmatpush1.msra.mxu0 0.0
    %87 = vmatprep.subr.mxu0 0.0
    %88 = vmatpush1.msra.mxu0 0.0
    %89 = vmatprep.subr.mxu0 0.0
    %90 = vmatpush1.msra.mxu0 0.0
    %91 = vmatprep.subr.mxu0 0.0
    %92 = vmatpush1.msra.mxu0 0.0
    %93 = vmatprep.subr.mxu0 0.0
    %94 = vmatpush1.msra.mxu0 0.0
    %95 = vmatprep.subr.mxu0 0.0
    %96 = vmatpush1.msra.mxu0 0.0
    %97 = vmatprep.subr.mxu0 0.0
    %98 = vmatpush1.msra.mxu0 0.0
    %99 = vmatprep.subr.mxu0 0.0
    %100 = vmatpush1.msra.mxu0 0.0
    %101 = vmatprep.subr.mxu0 0.0
    %102 = vmatpush1.msra.mxu0 0.0
    %103 = vmatprep.subr.mxu0 0.0
    %104 = vmatpush1.msra.mxu0 0.0
    %105 = vmatprep.subr.mxu0 0.0
    %106 = vmatpush1.msra.mxu0 0.0
    %107 = vmatprep.subr.mxu0 0.0
    %108 = vmatpush1.msra.mxu0 0.0
    %109 = vmatprep.subr.mxu0 0.0
    %110 = vmatpush1.msra.mxu0 0.0
    %111 = vmatprep.subr.mxu0 0.0
    %112 = vmatpush1.msra.mxu0 0.0
    %113 = vmatprep.subr.mxu0 0.0
    %114 = vmatpush1.msra.mxu0 0.0
    %115 = vmatprep.subr.mxu0 0.0
    %116 = vmatpush1.msra.mxu0 0.0
    %117 = vmatprep.subr.mxu0 0.0
    %118 = vmatpush1.msra.mxu0 0.0
    %119 = vmatprep.subr.mxu0 0.0
    %120 = vmatpush1.msra.mxu0 0.0
    %121 = vmatprep.subr.mxu0 0.0
    %122 = vmatpush1.msra.mxu0 0.0
    %123 = vmatprep.subr.mxu0 0.0
    %124 = vmatpush1.msra.mxu0 0.0
    %125 = vmatprep.subr.mxu0 0.0
    %126 = vmatpush1.msra.mxu0 0.0
    %127 = vmatprep.subr.mxu0 0.0
    %128 = vmatpush1.msra.mxu0 0.0
    %129 = vmatprep.subr.mxu0 0.0
    %130 = vmatpush1.msra.mxu0 0.0
    %131 = vmatprep.subr.mxu0 0.0
    %132 = vmatpush1.msra.mxu0 0.0
    %133 = vmatprep.subr.mxu0 0.0
    %134 = vmatpush1.msra.mxu0 0.0
    %135 = vmatprep.subr.mxu0 0.0
    %136 = vmatpush1.msra.mxu0 0.0
    %137 = vmatprep.subr.mxu0 0.0
    %138 = vmatpush1.msra.mxu0 0.0
    %139 = vmatprep.mubr.f32.mxu0 0.0
    %140 = vmatmul.mubr.f32.gmra.mrb[0].mxu0 %v60
    %v141 = vpop.f32.mrb[0].mxu0
    %v142 = vadd.f32 %v41, %v141
    %v143 = vpop.f32.mrb[0].mxu0
    %144 = vmatprep.mubr.f32.mxu0 0.0
    %145 = vmatmul.mubr.f32.gmra.mrb[0].mxu0 %v63
    %v146 = vpop.f32.mrb[0].mxu0
    %v147 = vadd.f32 %v46, %v146
    %v148 = vpop.f32.mrb[0].mxu0
    %149 = vmatprep.mubr.f32.mxu0 0.0
    %150 = vmatmul.mubr.f32.gmra.mrb[0].mxu0 %v66
    %v151 = vpop.f32.mrb[0].mxu0
    %v152 = vadd.f32 %v51, %v151
    %v153 = vpop.f32.mrb[0].mxu0
    %154 = vmatprep.mubr.f32.mxu0 0.0
    %155 = vmatmul.mubr.f32.gmra.mrb[0].mxu0 %v69
    %v156 = vpop.f32.mrb[0].mxu0
    %v157 = vadd.f32 %v56, %v156
    %v158 = vpop.f32.mrb[0].mxu0
    %159 = vdwg.mxu0
    %v160 = vmax.f32 %v142, 0.0
    %v161 = vmax.f32 %v147, 0.0
    %v162 = vmax.f32 %v152, 0.0
    %v163 = vmax.f32 %v157, 0.0
    %v164 = vld [vmem:[%s3] sm:$0xff]
    %v165 = vld [vmem:[%s3 + $0x8] sm:$0xff]
    %v166 = vld [vmem:[%s3 + $0x10] sm:$0xff]
    %v167 = vld [vmem:[%s3 + $0x18] sm:$0xff]
    %v168 = vld [vmem:[%s4] sm:$0xff]
    %v169 = vld [vmem:[%s4 + $0x8] sm:$0xff]
    %v170 = vld [vmem:[%s4 + $0x10] sm:$0xff]
    %v171 = vld [vmem:[%s4 + $0x18] sm:$0xff]
    %173 = vset.pattern.permute.xlu0 0
    %174 = vperm.xlu0 %173, %v168
    %v175 = vpop.permute.xlu0 %174
    %178 = vset.pattern.permute.xlu0 0
    %179 = vperm.xlu0 %178, %v169
    %v180 = vpop.permute.xlu0 %179
    %183 = vset.pattern.permute.xlu0 0
    %184 = vperm.xlu0 %183, %v170
    %v185 = vpop.permute.xlu0 %184
    %188 = vset.pattern.permute.xlu0 0
    %189 = vperm.xlu0 %188, %v171
    %v190 = vpop.permute.xlu0 %189
    %vm192 = vcmask 261120
    %v194 = vsel %vm192, %v164, 0
    %v197 = vsel %vm192, %v165, 0
    %v200 = vsel %vm192, %v166, 0
    %v203 = vsel %vm192, %v167, 0
    %205 = vmatprep.subr.mxu0 0.0
    %206 = vmatpush1.msra.mxu0 %v160
    %207 = vmatprep.subr.mxu0 0.0
    %208 = vmatpush1.msra.mxu0 %v161
    %209 = vmatprep.subr.mxu0 0.0
    %210 = vmatpush1.msra.mxu0 %v162
    %211 = vmatprep.subr.mxu0 0.0
    %212 = vmatpush1.msra.mxu0 %v163
    %213 = vmatprep.subr.mxu0 0.0
    %214 = vmatpush1.msra.mxu0 0.0
    %215 = vmatprep.subr.mxu0 0.0
    %216 = vmatpush1.msra.mxu0 0.0
    %217 = vmatprep.subr.mxu0 0.0
    %218 = vmatpush1.msra.mxu0 0.0
    %219 = vmatprep.subr.mxu0 0.0
    %220 = vmatpush1.msra.mxu0 0.0
    %221 = vmatprep.subr.mxu0 0.0
    %222 = vmatpush1.msra.mxu0 0.0
    %223 = vmatprep.subr.mxu0 0.0
    %224 = vmatpush1.msra.mxu0 0.0
    %225 = vmatprep.subr.mxu0 0.0
    %226 = vmatpush1.msra.mxu0 0.0
    %227 = vmatprep.subr.mxu0 0.0
    %228 = vmatpush1.msra.mxu0 0.0
    %229 = vmatprep.subr.mxu0 0.0
    %230 = vmatpush1.msra.mxu0 0.0
    %231 = vmatprep.subr.mxu0 0.0
    %232 = vmatpush1.msra.mxu0 0.0
    %233 = vmatprep.subr.mxu0 0.0
    %234 = vmatpush1.msra.mxu0 0.0
    %235 = vmatprep.subr.mxu0 0.0
    %236 = vmatpush1.msra.mxu0 0.0
    %237 = vmatprep.subr.mxu0 0.0
    %238 = vmatpush1.msra.mxu0 0.0
    %239 = vmatprep.subr.mxu0 0.0
    %240 = vmatpush1.msra.mxu0 0.0
    %241 = vmatprep.subr.mxu0 0.0
    %242 = vmatpush1.msra.mxu0 0.0
    %243 = vmatprep.subr.mxu0 0.0
    %244 = vmatpush1.msra.mxu0 0.0
    %245 = vmatprep.subr.mxu0 0.0
    %246 = vmatpush1.msra.mxu0 0.0
    %247 = vmatprep.subr.mxu0 0.0
    %248 = vmatpush1.msra.mxu0 0.0
    %249 = vmatprep.subr.mxu0 0.0
    %250 = vmatpush1.msra.mxu0 0.0
    %251 = vmatprep.subr.mxu0 0.0
    %252 = vmatpush1.msra.mxu0 0.0
    %253 = vmatprep.subr.mxu0 0.0
    %254 = vmatpush1.msra.mxu0 0.0
    %255 = vmatprep.subr.mxu0 0.0
    %256 = vmatpush1.msra.mxu0 0.0
    %257 = vmatprep.subr.mxu0 0.0
    %258 = vmatpush1.msra.mxu0 0.0
    %259 = vmatprep.subr.mxu0 0.0
    %260 = vmatpush1.msra.mxu0 0.0
    %261 = vmatprep.subr.mxu0 0.0
    %262 = vmatpush1.msra.mxu0 0.0
    %263 = vmatprep.subr.mxu0 0.0
    %264 = vmatpush1.msra.mxu0 0.0
    %265 = vmatprep.subr.mxu0 0.0
    %266 = vmatpush1.msra.mxu0 0.0
    %267 = vmatprep.subr.mxu0 0.0
    %268 = vmatpush1.msra.mxu0 0.0
    %269 = vmatprep.mubr.f32.mxu0 0.0
    %270 = vmatmul.mubr.f32.gmra.mrb[0].mxu0 %v194
    %v271 = vpop.f32.mrb[0].mxu0
    %v272 = vadd.f32 %v175, %v271
    %v273 = vpop.f32.mrb[0].mxu0
    %274 = vmatprep.mubr.f32.mxu0 0.0
    %275 = vmatmul.mubr.f32.gmra.mrb[0].mxu0 %v197
    %v276 = vpop.f32.mrb[0].mxu0
    %v277 = vadd.f32 %v180, %v276
    %v278 = vpop.f32.mrb[0].mxu0
    %279 = vmatprep.mubr.f32.mxu0 0.0
    %280 = vmatmul.mubr.f32.gmra.mrb[0].mxu0 %v200
    %v281 = vpop.f32.mrb[0].mxu0
    %v282 = vadd.f32 %v185, %v281
    %v283 = vpop.f32.mrb[0].mxu0
    %284 = vmatprep.mubr.f32.mxu0 0.0
    %285 = vmatmul.mubr.f32.gmra.mrb[0].mxu0 %v203
    %v286 = vpop.f32.mrb[0].mxu0
    %v287 = vadd.f32 %v190, %v286
    %v288 = vpop.f32.mrb[0].mxu0
    %289 = vdwg.mxu0
    %v290 = vmax.f32 %v272, 0.0
    %v291 = vmax.f32 %v277, 0.0
    %v292 = vmax.f32 %v282, 0.0
    %v293 = vmax.f32 %v287, 0.0
    %v294 = vld [vmem:[%s5] sm:$0xff]
    %v295 = vld [vmem:[%s5 + $0x8] sm:$0xff]
    %v296 = vld [vmem:[%s5 + $0x10] sm:$0xff]
    %v297 = vld [vmem:[%s5 + $0x18] sm:$0xff]
    %299 = vset.pattern.permute.xlu0 0
    %300 = vperm.xlu0 %299, %v294
    %v301 = vpop.permute.xlu0 %300
    %304 = vset.pattern.permute.xlu0 0
    %305 = vperm.xlu0 %304, %v295
    %v306 = vpop.permute.xlu0 %305
    %309 = vset.pattern.permute.xlu0 0
    %310 = vperm.xlu0 %309, %v296
    %v311 = vpop.permute.xlu0 %310
    %314 = vset.pattern.permute.xlu0 0
    %315 = vperm.xlu0 %314, %v297
    %v316 = vpop.permute.xlu0 %315
    %v318 = vmul.f32 %v290, %v301
    %v319 = vmul.f32 %v291, %v306
    %v320 = vmul.f32 %v292, %v311
    %v321 = vmul.f32 %v293, %v316
    %v322 = vadd.f32 %v318, %v319
    %v323 = vadd.f32 %v322, %v320
    %v324 = vadd.f32 %v323, %v321
    %v325 = vrot.slane %v324, 4
    %v326 = vadd.f32 %v324, %v325
    %v327 = vrot.slane %v326, 2
    %v328 = vadd.f32 %v326, %v327
    %v329 = vrot.slane %v328, 1
    %v330 = vadd.f32 %v328, %v329
    %s331 = sld [smem:[#allocation2]]
    %v332 = vstv %s331
    %v333 = vadd.f32 %v330, %v332
    %334 = vst [vmem:[#allocation3] sm:$0x1] %v333
    // Predicated region
    $region30: #{tpu_custom_call.1} parent=1 // pred_check
      _
    $region31: #{tpu_custom_call.1} parent=1 // pred_check_branch
      %336 = sbr.rel (0) target = $region33
    $region32: #{tpu_custom_call.1} parent=1 // pred_region
      %s338 = ssub.s32 16, 16
      %339 = vsyncadd [#allocation4], %s338
      %s341 = sshll.u32 [#allocation3], 4
      %s342 = int_to_ptr.vmem [resolvable:$true] %s341
      %344 = dma.vmem_to_hbm [thread:$0]  %s342, 16, %s7, [#allocation4]
    $region33: #{tpu_custom_call.1} parent=1 // pred_fallthru
      _
    // Predicated region
    $region34: #{tpu_custom_call.1} parent=1 // pred_check
      _
    $region35: #{tpu_custom_call.1} parent=1 // pred_check_branch
      %346 = sbr.rel (0) target = $region37
    $region36: #{tpu_custom_call.1} parent=1 // pred_region
      %347 = dma.done [#allocation4], 16
    $region37: #{tpu_custom_call.1} parent=1 // pred_fallthru
      _
    %348 = vsyncpa [#allocation4], 1

</llo_original>
